<compile_context>
chip_gen: v6e
topology: v6e:2x2x1
jax: 0.10.0
libtpu: 0.0.40
codegen_flags: <defaults>
</compile_context>

<pallas_src>
import jax
import jax.numpy as jnp
from jax.experimental import pallas as pl
from jax.experimental.pallas import tpu as pltpu


# ---------------------------------------------------------------------------
# Kernel: one fused block-diagonal MLP computing both Q heads.
# ---------------------------------------------------------------------------
def fused_double_q_kernel(s_ref, w1_ref, w2_ref, w3_ref, b_ref, out_ref):
    h1_dim = w1_ref.shape[1]
    h2_dim = w2_ref.shape[1]
    o_dim = w3_ref.shape[1]

    s = s_ref[...]
    h = jnp.dot(s, w1_ref[...], preferred_element_type=jnp.float32)
    h = jnp.maximum(h + b_ref[0:1, 0:h1_dim], 0.0)            # ReLU
    h = jnp.dot(h, w2_ref[...], preferred_element_type=jnp.float32)
    h = jnp.maximum(h + b_ref[1:2, 0:h2_dim], 0.0)            # ReLU
    # Output activation is Identity; (batch, 2*action_dim) lane-concatenated.
    out_ref[...] = (jnp.dot(h, w3_ref[...], preferred_element_type=jnp.float32)
                    + b_ref[2:3, 0:o_dim])


# ---------------------------------------------------------------------------
# Parameter packing (wrapper side, runs as cheap XLA ops / can be cached).
# ---------------------------------------------------------------------------
def _block_diag(a, b):
    """[[A, 0], [0, B]] — exact zeros keep the two heads independent."""
    z_ab = jnp.zeros((a.shape[0], b.shape[1]), a.dtype)
    z_ba = jnp.zeros((b.shape[0], a.shape[1]), b.dtype)
    top = jnp.concatenate([a, z_ab], axis=1)
    bot = jnp.concatenate([z_ba, b], axis=1)
    return jnp.concatenate([top, bot], axis=0)


def _pack_double_q_params(params_q1, params_q2):
    """Fuse both heads' params into 3 weight slabs + one (3, 128k) bias slab."""
    w1a, b1a, w2a, b2a, w3a, b3a = params_q1
    w1b, b1b, w2b, b2b, w3b, b3b = params_q2

    w1 = jnp.concatenate([w1a, w1b], axis=1)      # (state_dim, 2*h1)
    w2 = _block_diag(w2a, w2b)                    # (2*h1, 2*h2)
    w3 = _block_diag(w3a, w3b)                    # (2*h2, 2*action_dim)

    b1 = jnp.concatenate([b1a.reshape(1, -1), b1b.reshape(1, -1)], axis=1)
    b2 = jnp.concatenate([b2a.reshape(1, -1), b2b.reshape(1, -1)], axis=1)
    b3 = jnp.concatenate([b3a.reshape(1, -1), b3b.reshape(1, -1)], axis=1)

    max_w = max(b1.shape[1], b2.shape[1], b3.shape[1])
    width = ((max_w + 127) // 128) * 128          # lane-aligned bias slab
    pad = lambda b: jnp.pad(b, ((0, 0), (0, width - b.shape[1])))
    bias = jnp.concatenate([pad(b1), pad(b2), pad(b3)], axis=0)  # (3, width)
    return w1, w2, w3, bias


# ---------------------------------------------------------------------------
# Wrapper.
# ---------------------------------------------------------------------------
def double_q_net(s, params_q1, params_q2, *, block_batch=512):
    """params_q* = (w1, b1, w2, b2, w3, b3) with w: (in, out), b: (1, out)."""
    s = jnp.asarray(s, jnp.float32)
    batch, state_dim = s.shape
    action_dim = params_q1[-1].shape[-1]

    w1, w2, w3, bias = _pack_double_q_params(params_q1, params_q2)
    h1_dim, h2_dim, o_dim = w1.shape[1], w2.shape[1], w3.shape[1]
    bias_w = bias.shape[1]

    # Batch tiling: whole batch in one block when small, else 512-row tiles
    # (multiple of the 8-row f32 sublane; amortizes ~0.35us/grid-step).
    if batch <= block_batch:
        tb = batch
        s_p = s
    else:
        tb = block_batch
        pad_rows = (-batch) % tb
        s_p = jnp.pad(s, ((0, pad_rows), (0, 0))) if pad_rows else s
    padded_batch = s_p.shape[0]
    grid = (padded_batch // tb,)

    flops = 2 * padded_batch * (state_dim * h1_dim + h1_dim * h2_dim
                                + h2_dim * o_dim)
    bytes_accessed = 4 * (s_p.size + w1.size + w2.size + w3.size + bias.size
                          + padded_batch * o_dim)

    out = pl.pallas_call(
        fused_double_q_kernel,
        out_shape=jax.ShapeDtypeStruct((padded_batch, o_dim), jnp.float32),
        grid_spec=pltpu.PrefetchScalarGridSpec(
            num_scalar_prefetch=0,
            grid=grid,
            in_specs=[
                pl.BlockSpec((tb, state_dim), lambda i: (i, 0)),   # state tile
                pl.BlockSpec((state_dim, h1_dim), lambda i: (0, 0)),  # resident
                pl.BlockSpec((h1_dim, h2_dim), lambda i: (0, 0)),     # resident
                pl.BlockSpec((h2_dim, o_dim), lambda i: (0, 0)),      # resident
                pl.BlockSpec((3, bias_w), lambda i: (0, 0)),          # resident
            ],
            out_specs=pl.BlockSpec((tb, o_dim), lambda i: (i, 0)),
        ),
        compiler_params=pltpu.CompilerParams(
            dimension_semantics=("parallel",)),     # megacore on v7x, no-op elsewhere
        cost_estimate=pl.CostEstimate(
            flops=flops, transcendentals=0, bytes_accessed=bytes_accessed),
    )(s_p, w1, w2, w3, bias)

    q1 = out[:batch, :action_dim]
    q2 = out[:batch, action_dim:2 * action_dim]
    return q1, q2


# ---------------------------------------------------------------------------
# Deterministic init mimicking torch.nn.Linear defaults + pure-JAX reference.
# ---------------------------------------------------------------------------
def init_linear(key, in_dim, out_dim):
    kw, kb = jax.random.split(key)
    bound = 1.0 / jnp.sqrt(jnp.float32(in_dim))
    w = jax.random.uniform(kw, (in_dim, out_dim), jnp.float32, -bound, bound)
    b = jax.random.uniform(kb, (1, out_dim), jnp.float32, -bound, bound)
    return w, b


def init_mlp(key, layer_shape):
    keys = jax.random.split(key, len(layer_shape) - 1)
    params = []
    for k, din, dout in zip(keys, layer_shape[:-1], layer_shape[1:]):
        w, b = init_linear(k, din, dout)
        params += [w, b]
    return tuple(params)


def reference_forward(s, params):
    w1, b1, w2, b2, w3, b3 = params
    h = jnp.maximum(s @ w1 + b1, 0.0)
    h = jnp.maximum(h @ w2 + b2, 0.0)
    return h @ w3 + b3


if __name__ == "__main__":
    batch, state_dim, action_dim = 4, 8, 6
    hid_shape = (32, 32)
    layers = [state_dim] + list(hid_shape) + [action_dim]

    root = jax.random.PRNGKey(0)
    ks, k1, k2 = jax.random.split(root, 3)

    s = jax.random.normal(ks, (batch, state_dim), jnp.float32)
    params_q1 = init_mlp(k1, layers)
    params_q2 = init_mlp(k2, layers)

    q1, q2 = double_q_net(s, params_q1, params_q2)
    jax.block_until_ready((q1, q2))

    r1 = reference_forward(s, params_q1)
    r2 = reference_forward(s, params_q2)
    assert q1.shape == (batch, action_dim) and q2.shape == (batch, action_dim)
    assert jnp.allclose(q1, r1, atol=1e-5), "Q1 mismatch vs reference"
    assert jnp.allclose(q2, r2, atol=1e-5), "Q2 mismatch vs reference"

    print("KERNEL_OK")
</pallas_src>

<mosaic_0001>
module attributes {stable_mosaic.version = 11 : i64} {
  func.func @fused_double_q_kernel(%arg0: i32, %arg1: memref<4x8xf32, #tpu.memory_space<vmem>>, %arg2: memref<8x64xf32, #tpu.memory_space<vmem>>, %arg3: memref<64x64xf32, #tpu.memory_space<vmem>>, %arg4: memref<64x12xf32, #tpu.memory_space<vmem>>, %arg5: memref<3x128xf32, #tpu.memory_space<vmem>>, %arg6: memref<4x12xf32, #tpu.memory_space<vmem>>) attributes {dimension_semantics = [#tpu.dimension_semantics<parallel>], iteration_bounds = array<i64: 1>, scalar_prefetch = 0 : i64, scratch_operands = 0 : i64, tpu.core_type = #tpu.core_type<tc>, window_params = [{transform_indices = @transform_0, window_bounds = array<i64: 4, 8>}, {pipeline_mode = #tpu.pipeline_mode<synchronous>, transform_indices = @transform_1, window_bounds = array<i64: 8, 64>}, {pipeline_mode = #tpu.pipeline_mode<synchronous>, transform_indices = @transform_2, window_bounds = array<i64: 64, 64>}, {pipeline_mode = #tpu.pipeline_mode<synchronous>, transform_indices = @transform_3, window_bounds = array<i64: 64, 12>}, {pipeline_mode = #tpu.pipeline_mode<synchronous>, transform_indices = @transform_4, window_bounds = array<i64: 3, 128>}, {transform_indices = @transform_5, window_bounds = array<i64: 4, 12>}]} {
    %c0 = arith.constant 0 : index
    %c0_0 = arith.constant 0 : index
    %0 = vector.load %arg1[%c0, %c0_0] : memref<4x8xf32, #tpu.memory_space<vmem>>, vector<4x8xf32>
    %c0_1 = arith.constant 0 : index
    %c0_2 = arith.constant 0 : index
    %1 = vector.load %arg2[%c0_1, %c0_2] : memref<8x64xf32, #tpu.memory_space<vmem>>, vector<8x64xf32>
    %cst = arith.constant dense<0.000000e+00> : vector<4x64xf32>
    %2 = tpu.matmul %0, %1, %cst {dimension_numbers = #tpu.dot_dimension_numbers<[1], [0], [0], [1], [0, 0, 1, 1], [], []>} : vector<4x8xf32>, vector<8x64xf32>, vector<4x64xf32> -> vector<4x64xf32>
    %c0_3 = arith.constant 0 : index
    %c0_4 = arith.constant 0 : index
    %3 = vector.load %arg5[%c0_3, %c0_4] : memref<3x128xf32, #tpu.memory_space<vmem>>, vector<1x64xf32>
    %4 = vector.broadcast %3 : vector<1x64xf32> to vector<4x64xf32>
    %5 = arith.addf %2, %4 : vector<4x64xf32>
    %cst_5 = arith.constant 0.000000e+00 : f32
    %6 = vector.broadcast %cst_5 : f32 to vector<4x64xf32>
    %7 = arith.maximumf %5, %6 : vector<4x64xf32>
    %c0_6 = arith.constant 0 : index
    %c0_7 = arith.constant 0 : index
    %8 = vector.load %arg3[%c0_6, %c0_7] : memref<64x64xf32, #tpu.memory_space<vmem>>, vector<64x64xf32>
    %cst_8 = arith.constant dense<0.000000e+00> : vector<4x64xf32>
    %9 = tpu.matmul %7, %8, %cst_8 {dimension_numbers = #tpu.dot_dimension_numbers<[1], [0], [0], [1], [0, 0, 1, 1], [], []>} : vector<4x64xf32>, vector<64x64xf32>, vector<4x64xf32> -> vector<4x64xf32>
    %c1 = arith.constant 1 : index
    %c0_9 = arith.constant 0 : index
    %10 = vector.load %arg5[%c1, %c0_9] : memref<3x128xf32, #tpu.memory_space<vmem>>, vector<1x64xf32>
    %11 = vector.broadcast %10 : vector<1x64xf32> to vector<4x64xf32>
    %12 = arith.addf %9, %11 : vector<4x64xf32>
    %cst_10 = arith.constant 0.000000e+00 : f32
    %13 = vector.broadcast %cst_10 : f32 to vector<4x64xf32>
    %14 = arith.maximumf %12, %13 : vector<4x64xf32>
    %c0_11 = arith.constant 0 : index
    %c0_12 = arith.constant 0 : index
    %15 = vector.load %arg4[%c0_11, %c0_12] : memref<64x12xf32, #tpu.memory_space<vmem>>, vector<64x12xf32>
    %cst_13 = arith.constant dense<0.000000e+00> : vector<4x12xf32>
    %16 = tpu.matmul %14, %15, %cst_13 {dimension_numbers = #tpu.dot_dimension_numbers<[1], [0], [0], [1], [0, 0, 1, 1], [], []>} : vector<4x64xf32>, vector<64x12xf32>, vector<4x12xf32> -> vector<4x12xf32>
    %c2 = arith.constant 2 : index
    %c0_14 = arith.constant 0 : index
    %17 = vector.load %arg5[%c2, %c0_14] : memref<3x128xf32, #tpu.memory_space<vmem>>, vector<1x12xf32>
    %18 = vector.broadcast %17 : vector<1x12xf32> to vector<4x12xf32>
    %19 = arith.addf %16, %18 : vector<4x12xf32>
    %c0_15 = arith.constant 0 : index
    %c0_16 = arith.constant 0 : index
    %20 = vector.load %arg6[%c0_15, %c0_16] : memref<4x12xf32, #tpu.memory_space<vmem>>, vector<4x12xf32>
    tpu.vector_store %arg6[%c0_15, %c0_16], %19 {strides = array<i32>} : memref<4x12xf32, #tpu.memory_space<vmem>>, vector<4x12xf32>,
    return
  }
  func.func @transform_0(%arg0: i32) -> (i32, i32) {
    %c0_i32 = arith.constant 0 : i32
    %c0_i32_0 = arith.constant 0 : i32
    return %arg0, %c0_i32 : i32, i32
  }
  func.func @transform_1(%arg0: i32) -> (i32, i32) {
    %c0_i32 = arith.constant 0 : i32
    %c0_i32_0 = arith.constant 0 : i32
    %c0_i32_1 = arith.constant 0 : i32
    return %c0_i32, %c0_i32_0 : i32, i32
  }
  func.func @transform_2(%arg0: i32) -> (i32, i32) {
    %c0_i32 = arith.constant 0 : i32
    %c0_i32_0 = arith.constant 0 : i32
    %c0_i32_1 = arith.constant 0 : i32
    return %c0_i32, %c0_i32_0 : i32, i32
  }
  func.func @transform_3(%arg0: i32) -> (i32, i32) {
    %c0_i32 = arith.constant 0 : i32
    %c0_i32_0 = arith.constant 0 : i32
    %c0_i32_1 = arith.constant 0 : i32
    return %c0_i32, %c0_i32_0 : i32, i32
  }
  func.func @transform_4(%arg0: i32) -> (i32, i32) {
    %c0_i32 = arith.constant 0 : i32
    %c0_i32_0 = arith.constant 0 : i32
    %c0_i32_1 = arith.constant 0 : i32
    return %c0_i32, %c0_i32_0 : i32, i32
  }
  func.func @transform_5(%arg0: i32) -> (i32, i32) {
    %c0_i32 = arith.constant 0 : i32
    %c0_i32_0 = arith.constant 0 : i32
    return %arg0, %c0_i32 : i32, i32
  }
}

</mosaic_0001>

<llo_original>
// kernel: tpu_custom_call.1
$region0: #{tpu_custom_call.1}
  #allocation0 [shape = 'u32[]', space=smem, size = 0x4, offset = 0x4, fixed_abs, tag = 'smem constant byte address 0x4 - core index']
  #allocation1 [shape = 'u32[144,128]{1,0:T(1,128)}', space=vmem, size = 0x12000, scoped, tag = 'internal scratch']
  %s0 = inlined_call_operand.vmem [shape: f32[4,8], index: 0, kind: input, shape index: {}]
  %s1 = inlined_call_operand.vmem [shape: f32[8,64], index: 1, kind: input, shape index: {}]
  %s2 = inlined_call_operand.vmem [shape: f32[64,64], index: 2, kind: input, shape index: {}]
  %s3 = inlined_call_operand.vmem [shape: f32[64,12], index: 3, kind: input, shape index: {}]
  %s4 = inlined_call_operand.vmem [shape: f32[3,128], index: 4, kind: input, shape index: {}]
  %s5 = inlined_call_operand.hbm [shape: f32[4,12], index: 5, kind: output, shape index: {}]
  %s6 = sld [smem:[#allocation0]]
  $region30: #{tpu_custom_call.1} parent=0
    _
  %s8 = ssub.s32 1, %s6
  %s9 = scalar_select 0, %s8, %s6
  $region1: #{tpu_custom_call.1} parent=0
    #allocation2 [shape = 'u8[2048]{0}', space=vmem, size = 0x800, scoped, tag = 'output window, operand 0, single buffered']
    #allocation3 [shape = 's32[1]{0}', space=sflag, size = 0x4, scoped, tag = 'scoped memory for tpu_custom_call.1']
    %10 = vsyncpa [#allocation3], 0
    // Predicated region
    $region2: #{tpu_custom_call.1} parent=1 // pred_check
      _
    $region3: #{tpu_custom_call.1} parent=1 // pred_check_branch
      %12 = sbr.rel (0) target = $region5
    $region4: #{tpu_custom_call.1} parent=1 // pred_region
      _
    $region5: #{tpu_custom_call.1} parent=1 // pred_fallthru
      _
    // Predicated region
    $region6: #{tpu_custom_call.1} parent=1 // pred_check
      _
    $region7: #{tpu_custom_call.1} parent=1 // pred_check_branch
      %14 = sbr.rel (0) target = $region9
    $region8: #{tpu_custom_call.1} parent=1 // pred_region
      _
    $region9: #{tpu_custom_call.1} parent=1 // pred_fallthru
      _
    // Predicated region
    $region10: #{tpu_custom_call.1} parent=1 // pred_check
      _
    $region11: #{tpu_custom_call.1} parent=1 // pred_check_branch
      %16 = sbr.rel (0) target = $region13
    $region12: #{tpu_custom_call.1} parent=1 // pred_region
      _
    $region13: #{tpu_custom_call.1} parent=1 // pred_fallthru
      _
    // Predicated region
    $region14: #{tpu_custom_call.1} parent=1 // pred_check
      _
    $region15: #{tpu_custom_call.1} parent=1 // pred_check_branch
      %18 = sbr.rel (0) target = $region17
    $region16: #{tpu_custom_call.1} parent=1 // pred_region
      _
    $region17: #{tpu_custom_call.1} parent=1 // pred_fallthru
      _
    // Predicated region
    $region18: #{tpu_custom_call.1} parent=1 // pred_check
      _
    $region19: #{tpu_custom_call.1} parent=1 // pred_check_branch
      %20 = sbr.rel (0) target = $region21
    $region20: #{tpu_custom_call.1} parent=1 // pred_region
      _
    $region21: #{tpu_custom_call.1} parent=1 // pred_fallthru
      _
    %v21 = vld [vmem:[%s0] sm:$0xf]
    %v22 = vld [vmem:[%s1] sm:$0xff]
    %v23 = vld [vmem:[%s4] sm:$0x1]
    %v24 = vlaneseq
    %v25 = vshrl.u32 %v24, 7
    %v26 = vsub.s32 0, %v25
    %v27 = vrot.slane %v23, %v26
    %vm28 = vcmask 64512
    %v30 = vsel %vm28, %v21, 0
    %32 = vmatprep.subr.mxu0 0.0
    %33 = vmatpush1.msra.mxu0 0.0
    %34 = vmatprep.subr.mxu0 0.0
    %35 = vmatpush1.msra.mxu0 0.0
    %36 = vmatprep.subr.mxu0 0.0
    %37 = vmatpush1.msra.mxu0 0.0
    %38 = vmatprep.subr.mxu0 0.0
    %39 = vmatpush1.msra.mxu0 0.0
    %40 = vmatprep.subr.mxu0 0.0
    %41 = vmatpush1.msra.mxu0 0.0
    %42 = vmatprep.subr.mxu0 0.0
    %43 = vmatpush1.msra.mxu0 0.0
    %44 = vmatprep.subr.mxu0 0.0
    %45 = vmatpush1.msra.mxu0 0.0
    %46 = vmatprep.subr.mxu0 0.0
    %47 = vmatpush1.msra.mxu0 0.0
    %48 = vmatprep.subr.mxu0 0.0
    %49 = vmatpush1.msra.mxu0 0.0
    %50 = vmatprep.subr.mxu0 0.0
    %51 = vmatpush1.msra.mxu0 0.0
    %52 = vmatprep.subr.mxu0 0.0
    %53 = vmatpush1.msra.mxu0 0.0
    %54 = vmatprep.subr.mxu0 0.0
    %55 = vmatpush1.msra.mxu0 0.0
    %56 = vmatprep.subr.mxu0 0.0
    %57 = vmatpush1.msra.mxu0 0.0
    %58 = vmatprep.subr.mxu0 0.0
    %59 = vmatpush1.msra.mxu0 0.0
    %60 = vmatprep.subr.mxu0 0.0
    %61 = vmatpush1.msra.mxu0 0.0
    %62 = vmatprep.subr.mxu0 0.0
    %63 = vmatpush1.msra.mxu0 %v22
    %64 = vmatprep.subr.mxu0 0.0
    %65 = vmatpush2.msra.mxu0 0.0
    %66 = vmatprep.subr.mxu0 0.0
    %67 = vmatpush2.msra.mxu0 0.0
    %68 = vmatprep.subr.mxu0 0.0
    %69 = vmatpush2.msra.mxu0 0.0
    %70 = vmatprep.subr.mxu0 0.0
    %71 = vmatpush2.msra.mxu0 0.0
    %72 = vmatprep.subr.mxu0 0.0
    %73 = vmatpush2.msra.mxu0 0.0
    %74 = vmatprep.subr.mxu0 0.0
    %75 = vmatpush2.msra.mxu0 0.0
    %76 = vmatprep.subr.mxu0 0.0
    %77 = vmatpush2.msra.mxu0 0.0
    %78 = vmatprep.subr.mxu0 0.0
    %79 = vmatpush2.msra.mxu0 0.0
    %80 = vmatprep.subr.mxu0 0.0
    %81 = vmatpush2.msra.mxu0 0.0
    %82 = vmatprep.subr.mxu0 0.0
    %83 = vmatpush2.msra.mxu0 0.0
    %84 = vmatprep.subr.mxu0 0.0
    %85 = vmatpush2.msra.mxu0 0.0
    %86 = vmatprep.subr.mxu0 0.0
    %87 = vmatpush2.msra.mxu0 0.0
    %88 = vmatprep.subr.mxu0 0.0
    %89 = vmatpush2.msra.mxu0 0.0
    %90 = vmatprep.subr.mxu0 0.0
    %91 = vmatpush2.msra.mxu0 0.0
    %92 = vmatprep.subr.mxu0 0.0
    %93 = vmatpush2.msra.mxu0 0.0
    %94 = vmatprep.subr.mxu0 0.0
    %95 = vmatpush2.msra.mxu0 0.0
    %96 = vmatprep.mubr.f32.mxu0 0.0
    %97 = vmatmul.mubr.f32.gmra.mxu0 %v30
    %v98 = vpop.f32.mrf.mxu0
    %v99 = vadd.f32 %v27, %v98
    %v100 = vpop.f32.mrf.mxu0
    %101 = vdwg.mxu0
    %v102 = vmax.f32 %v99, 0.0
    %v103 = vld [vmem:[%s2] sm:$0xff]
    %v104 = vld [vmem:[%s2 + $0x8] sm:$0xff]
    %v105 = vld [vmem:[%s2 + $0x10] sm:$0xff]
    %v106 = vld [vmem:[%s2 + $0x18] sm:$0xff]
    %v107 = vld [vmem:[%s2 + $0x20] sm:$0xff]
    %v108 = vld [vmem:[%s2 + $0x28] sm:$0xff]
    %v109 = vld [vmem:[%s2 + $0x30] sm:$0xff]
    %v110 = vld [vmem:[%s2 + $0x38] sm:$0xff]
    %v111 = vld [vmem:[%s4 + $0x1] sm:$0x1]
    %v112 = vlaneseq
    %v113 = vshrl.u32 %v112, 7
    %v114 = vsub.s32 0, %v113
    %v115 = vrot.slane %v111, %v114
    %vm116 = vcmask 523264
    %v118 = vsel %vm116, %v102, 0
    %120 = vmatprep.subr.mxu0 0.0
    %121 = vmatpush1.msra.mxu0 0.0
    %122 = vmatprep.subr.mxu0 0.0
    %123 = vmatpush1.msra.mxu0 0.0
    %124 = vmatprep.subr.mxu0 0.0
    %125 = vmatpush1.msra.mxu0 0.0
    %126 = vmatprep.subr.mxu0 0.0
    %127 = vmatpush1.msra.mxu0 0.0
    %128 = vmatprep.subr.mxu0 0.0
    %129 = vmatpush1.msra.mxu0 0.0
    %130 = vmatprep.subr.mxu0 0.0
    %131 = vmatpush1.msra.mxu0 0.0
    %132 = vmatprep.subr.mxu0 0.0
    %133 = vmatpush1.msra.mxu0 0.0
    %134 = vmatprep.subr.mxu0 0.0
    %135 = vmatpush1.msra.mxu0 0.0
    %136 = vmatprep.subr.mxu0 0.0
    %137 = vmatpush1.msra.mxu0 %v110
    %138 = vmatprep.subr.mxu0 0.0
    %139 = vmatpush1.msra.mxu0 %v109
    %140 = vmatprep.subr.mxu0 0.0
    %141 = vmatpush1.msra.mxu0 %v108
    %142 = vmatprep.subr.mxu0 0.0
    %143 = vmatpush1.msra.mxu0 %v107
    %144 = vmatprep.subr.mxu0 0.0
    %145 = vmatpush1.msra.mxu0 %v106
    %146 = vmatprep.subr.mxu0 0.0
    %147 = vmatpush1.msra.mxu0 %v105
    %148 = vmatprep.subr.mxu0 0.0
    %149 = vmatpush1.msra.mxu0 %v104
    %150 = vmatprep.subr.mxu0 0.0
    %151 = vmatpush1.msra.mxu0 %v103
    %152 = vmatprep.subr.mxu0 0.0
    %153 = vmatpush2.msra.mxu0 0.0
    %154 = vmatprep.subr.mxu0 0.0
    %155 = vmatpush2.msra.mxu0 0.0
    %156 = vmatprep.subr.mxu0 0.0
    %157 = vmatpush2.msra.mxu0 0.0
    %158 = vmatprep.subr.mxu0 0.0
    %159 = vmatpush2.msra.mxu0 0.0
    %160 = vmatprep.subr.mxu0 0.0
    %161 = vmatpush2.msra.mxu0 0.0
    %162 = vmatprep.subr.mxu0 0.0
    %163 = vmatpush2.msra.mxu0 0.0
    %164 = vmatprep.subr.mxu0 0.0
    %165 = vmatpush2.msra.mxu0 0.0
    %166 = vmatprep.subr.mxu0 0.0
    %167 = vmatpush2.msra.mxu0 0.0
    %168 = vmatprep.subr.mxu0 0.0
    %169 = vmatpush2.msra.mxu0 0.0
    %170 = vmatprep.subr.mxu0 0.0
    %171 = vmatpush2.msra.mxu0 0.0
    %172 = vmatprep.subr.mxu0 0.0
    %173 = vmatpush2.msra.mxu0 0.0
    %174 = vmatprep.subr.mxu0 0.0
    %175 = vmatpush2.msra.mxu0 0.0
    %176 = vmatprep.subr.mxu0 0.0
    %177 = vmatpush2.msra.mxu0 0.0
    %178 = vmatprep.subr.mxu0 0.0
    %179 = vmatpush2.msra.mxu0 0.0
    %180 = vmatprep.subr.mxu0 0.0
    %181 = vmatpush2.msra.mxu0 0.0
    %182 = vmatprep.subr.mxu0 0.0
    %183 = vmatpush2.msra.mxu0 0.0
    %184 = vmatprep.mubr.f32.mxu0 0.0
    %185 = vmatmul.mubr.f32.gmra.mxu0 %v118
    %v186 = vpop.f32.mrf.mxu0
    %v187 = vadd.f32 %v115, %v186
    %v188 = vpop.f32.mrf.mxu0
    %189 = vdwg.mxu0
    %v190 = vmax.f32 %v187, 0.0
    %v191 = vld [vmem:[%s3] sm:$0xff]
    %v192 = vld [vmem:[%s3 + $0x8] sm:$0xff]
    %v193 = vld [vmem:[%s3 + $0x10] sm:$0xff]
    %v194 = vld [vmem:[%s3 + $0x18] sm:$0xff]
    %v195 = vld [vmem:[%s3 + $0x20] sm:$0xff]
    %v196 = vld [vmem:[%s3 + $0x28] sm:$0xff]
    %v197 = vld [vmem:[%s3 + $0x30] sm:$0xff]
    %v198 = vld [vmem:[%s3 + $0x38] sm:$0xff]
    %v199 = vld [vmem:[%s4 + $0x2] sm:$0x1]
    %v200 = vlaneseq
    %v201 = vshrl.u32 %v200, 7
    %v202 = vsub.s32 0, %v201
    %v203 = vrot.slane %v199, %v202
    %v205 = vsel %vm116, %v190, 0
    %207 = vmatprep.subr.mxu0 0.0
    %208 = vmatpush1.msra.mxu0 0.0
    %209 = vmatprep.subr.mxu0 0.0
    %210 = vmatpush1.msra.mxu0 0.0
    %211 = vmatprep.subr.mxu0 0.0
    %212 = vmatpush1.msra.mxu0 0.0
    %213 = vmatprep.subr.mxu0 0.0
    %214 = vmatpush1.msra.mxu0 0.0
    %215 = vmatprep.subr.mxu0 0.0
    %216 = vmatpush1.msra.mxu0 0.0
    %217 = vmatprep.subr.mxu0 0.0
    %218 = vmatpush1.msra.mxu0 0.0
    %219 = vmatprep.subr.mxu0 0.0
    %220 = vmatpush1.msra.mxu0 0.0
    %221 = vmatprep.subr.mxu0 0.0
    %222 = vmatpush1.msra.mxu0 0.0
    %223 = vmatprep.subr.mxu0 0.0
    %224 = vmatpush1.msra.mxu0 %v198
    %225 = vmatprep.subr.mxu0 0.0
    %226 = vmatpush1.msra.mxu0 %v197
    %227 = vmatprep.subr.mxu0 0.0
    %228 = vmatpush1.msra.mxu0 %v196
    %229 = vmatprep.subr.mxu0 0.0
    %230 = vmatpush1.msra.mxu0 %v195
    %231 = vmatprep.subr.mxu0 0.0
    %232 = vmatpush1.msra.mxu0 %v194
    %233 = vmatprep.subr.mxu0 0.0
    %234 = vmatpush1.msra.mxu0 %v193
    %235 = vmatprep.subr.mxu0 0.0
    %236 = vmatpush1.msra.mxu0 %v192
    %237 = vmatprep.subr.mxu0 0.0
    %238 = vmatpush1.msra.mxu0 %v191
    %239 = vmatprep.subr.mxu0 0.0
    %240 = vmatpush2.msra.mxu0 0.0
    %241 = vmatprep.subr.mxu0 0.0
    %242 = vmatpush2.msra.mxu0 0.0
    %243 = vmatprep.subr.mxu0 0.0
    %244 = vmatpush2.msra.mxu0 0.0
    %245 = vmatprep.subr.mxu0 0.0
    %246 = vmatpush2.msra.mxu0 0.0
    %247 = vmatprep.subr.mxu0 0.0
    %248 = vmatpush2.msra.mxu0 0.0
    %249 = vmatprep.subr.mxu0 0.0
    %250 = vmatpush2.msra.mxu0 0.0
    %251 = vmatprep.subr.mxu0 0.0
    %252 = vmatpush2.msra.mxu0 0.0
    %253 = vmatprep.subr.mxu0 0.0
    %254 = vmatpush2.msra.mxu0 0.0
    %255 = vmatprep.subr.mxu0 0.0
    %256 = vmatpush2.msra.mxu0 0.0
    %257 = vmatprep.subr.mxu0 0.0
    %258 = vmatpush2.msra.mxu0 0.0
    %259 = vmatprep.subr.mxu0 0.0
    %260 = vmatpush2.msra.mxu0 0.0
    %261 = vmatprep.subr.mxu0 0.0
    %262 = vmatpush2.msra.mxu0 0.0
    %263 = vmatprep.subr.mxu0 0.0
    %264 = vmatpush2.msra.mxu0 0.0
    %265 = vmatprep.subr.mxu0 0.0
    %266 = vmatpush2.msra.mxu0 0.0
    %267 = vmatprep.subr.mxu0 0.0
    %268 = vmatpush2.msra.mxu0 0.0
    %269 = vmatprep.subr.mxu0 0.0
    %270 = vmatpush2.msra.mxu0 0.0
    %271 = vmatprep.mubr.f32.mxu0 0.0
    %272 = vmatmul.mubr.f32.gmra.mxu0 %v205
    %v273 = vpop.f32.mrf.mxu0
    %v274 = vadd.f32 %v203, %v273
    %v275 = vpop.f32.mrf.mxu0
    %276 = vdwg.mxu0
    %vm277 = vcmask 93184
    %278 = vst.msk [vmem:[#allocation2] sm:$0xf] %vm277, %v274
    // Predicated region
    $region22: #{tpu_custom_call.1} parent=1 // pred_check
      _
    $region23: #{tpu_custom_call.1} parent=1 // pred_check_branch
      %280 = sbr.rel (0) target = $region25
    $region24: #{tpu_custom_call.1} parent=1 // pred_region
      %s282 = ssub.s32 64, 64
      %283 = vsyncadd [#allocation3], %s282
      %s285 = sshll.u32 [#allocation2], 4
      %s286 = int_to_ptr.vmem [resolvable:$true] %s285
      %288 = dma.vmem_to_hbm [thread:$0]  %s286, 64, %s5, [#allocation3]
    $region25: #{tpu_custom_call.1} parent=1 // pred_fallthru
      _
    // Predicated region
    $region26: #{tpu_custom_call.1} parent=1 // pred_check
      _
    $region27: #{tpu_custom_call.1} parent=1 // pred_check_branch
      %290 = sbr.rel (0) target = $region29
    $region28: #{tpu_custom_call.1} parent=1 // pred_region
      %291 = dma.done [#allocation3], 64
    $region29: #{tpu_custom_call.1} parent=1 // pred_fallthru
      _
    %292 = vsyncpa [#allocation3], 1

</llo_original>
